<compile_context>
chip_gen: v6e
topology: v6e:2x2x1
jax: 0.10.0
libtpu: 0.0.40
codegen_flags: <defaults>
</compile_context>

<pallas_src>
from functools import partial

import jax
import jax.numpy as jnp
from jax.experimental import pallas as pl
from jax.experimental.pallas import tpu as pltpu

_LANE = 128


def _round_up(x, m):
    return ((x + m - 1) // m) * m


def _dice_kernel(pred_ref, tgt_ref, loss_ref, a_acc, bc_acc, *,
                 eps, naive, apply_sigmoid, tile_n, tile_d, num_k,
                 last_valid, mask_tail):
    """Processes one (tile_n, tile_d) tile; reduction axis is grid axis 1."""
    k = pl.program_id(1)

    @pl.when(k == 0)
    def _():
        a_acc[...] = jnp.zeros_like(a_acc)
        bc_acc[...] = jnp.zeros_like(bc_acc)

    num_chunks = tile_d // _LANE

    def accumulate(valid_cols):
        # valid_cols is a static Python int: number of valid columns in this
        # tile. Chunks fully past it are skipped at trace time; at most one
        # chunk needs a lane mask.
        a_part = jnp.zeros((tile_n, _LANE), jnp.float32)
        bc_part = jnp.zeros((tile_n, _LANE), jnp.float32)
        for c in range(num_chunks):
            lo = c * _LANE
            if lo >= valid_cols:
                break  # statically skip wholly out-of-bounds chunks
            # Inputs stream in their native dtype; cast + activate in-kernel.
            # Sigmoid is computed in f32 (matches reference numerics); on
            # v5e/v6e-f32 the kernel is HBM-bound so the EUP has slack.
            pc = pred_ref[:, lo:lo + _LANE].astype(jnp.float32)
            if apply_sigmoid:
                pc = jax.nn.sigmoid(pc)
            tc = tgt_ref[:, lo:lo + _LANE].astype(jnp.float32)
            if lo + _LANE > valid_cols:
                # Partial chunk: out-of-bounds lanes hold unspecified data;
                # select 0 there (jnp.where is NaN-safe).
                col = jax.lax.broadcasted_iota(jnp.int32, (tile_n, _LANE), 1)
                m = col < (valid_cols - lo)
                pc = jnp.where(m, pc, 0.0)
                tc = jnp.where(m, tc, 0.0)
            # Pure-VPU work: fold into lane-width partials (no XLU in hot loop).
            a_part = a_part + pc * tc
            if naive:
                bc_part = bc_part + (pc + tc)
            else:
                bc_part = bc_part + (pc * pc + tc * tc)
        a_acc[...] += a_part
        bc_acc[...] += bc_part

    if mask_tail:
        if num_k > 1:
            @pl.when(k < num_k - 1)
            def _():
                accumulate(tile_d)

        @pl.when(k == num_k - 1)
        def _():
            accumulate(last_valid)
    else:
        accumulate(tile_d)

    @pl.when(k == num_k - 1)
    def _():
        # Single cross-lane reduction per accumulator, once per row tile.
        a = jnp.sum(a_acc[...], axis=1, keepdims=True)
        bc = jnp.sum(bc_acc[...], axis=1, keepdims=True)
        if naive:
            dcoef = (2.0 * a + eps) / (bc + eps)
        else:
            dcoef = 2.0 * a / (bc + 2.0 * eps)
        loss_ref[...] = 1.0 - dcoef


def _weight_reduce_loss(loss, weight, reduction, avg_factor):
    """mmdet-style weight_reduce_loss on the (N,) per-sample loss."""
    if weight is not None:
        loss = loss * weight
    if avg_factor is None:
        if reduction == "mean":
            return jnp.mean(loss)
        if reduction == "sum":
            return jnp.sum(loss)
        return loss
    else:
        if reduction == "mean":
            return jnp.sum(loss) / avg_factor
        if reduction == "none":
            return loss
        raise ValueError('avg_factor can not be used with reduction="sum"')


def dice_loss_pallas(
    pred,
    target,
    weight=None,
    *,
    use_sigmoid=True,
    activate=True,
    reduction="mean",
    naive_dice=False,
    loss_weight=1.0,
    eps=1e-3,
    reduction_override=None,
    avg_factor=None,
    tile_d=None,
    tile_n=None,
    vmem_budget_bytes=20 * 1024 * 1024,
):
    assert reduction_override in (None, "none", "mean", "sum")
    reduction = reduction_override if reduction_override else reduction

    if activate:
        if use_sigmoid:
            apply_sigmoid = True
        else:
            # Matches the PyTorch module (softmax path not implemented there).
            raise NotImplementedError
    else:
        apply_sigmoid = False

    n = pred.shape[0]
    pred2 = pred.reshape(n, -1)      # native dtype, no wrapper upcast pass
    tgt2 = target.reshape(n, -1)     # native dtype, cast in-kernel
    d = pred2.shape[1]

    # ---- row tile -----------------------------------------------------------
    # Keep grid[0] >= 2 once n >= 16 so the "parallel" row axis can actually be
    # sharded across the two v7x TensorCores; partial row blocks must be a
    # multiple of 8 (or equal the full row extent).
    if tile_n is None:
        if n < 16:
            tile_n = n
        elif n <= 128:
            tile_n = max(8, _round_up(pl.cdiv(n, 2), 8))
        else:
            tile_n = 64
    else:
        tile_n = min(tile_n, n)
        if tile_n < n:
            tile_n = max(8, (tile_n // 8) * 8)

    # ---- D tile (multiple of 128, budget-clamped, 1K-4K sweet spot) ---------
    in_bytes = pred2.dtype.itemsize + tgt2.dtype.itemsize
    acc_bytes = 2 * tile_n * _LANE * 4                  # two (tile_n,128) f32 accs
    per_col_bytes = 2 * tile_n * in_bytes               # 2 pipeline buffers / input
    budget_cols = max(_LANE, (vmem_budget_bytes - acc_bytes) // max(per_col_bytes, 1))
    budget_cols = max(_LANE, (budget_cols // _LANE) * _LANE)

    if tile_d is None:
        tile_d = 2048
    tile_d = max(_LANE, min(_round_up(tile_d, _LANE),
                            _round_up(d, _LANE),
                            budget_cols,
                            4096))

    num_k = pl.cdiv(d, tile_d)
    mask_tail = (d % tile_d) != 0
    last_valid = d - (num_k - 1) * tile_d
    grid = (pl.cdiv(n, tile_n), num_k)

    # Couple the VMEM budget with the compiler's scoped limit.
    needed_bytes = 2 * tile_n * tile_d * in_bytes + acc_bytes + 2 * tile_n * 4
    vmem_limit_bytes = min(max(int(needed_bytes * 1.5) + (2 << 20), 16 << 20), 32 << 20)

    cost = pl.CostEstimate(
        flops=6 * n * d,
        transcendentals=(n * d) if apply_sigmoid else 0,
        bytes_accessed=n * d * in_bytes + n * 4,
    )

    per_sample = pl.pallas_call(
        partial(
            _dice_kernel,
            eps=eps,
            naive=naive_dice,
            apply_sigmoid=apply_sigmoid,
            tile_n=tile_n,
            tile_d=tile_d,
            num_k=num_k,
            last_valid=last_valid,
            mask_tail=mask_tail,
        ),
        out_shape=jax.ShapeDtypeStruct((n, 1), jnp.float32),
        grid_spec=pltpu.PrefetchScalarGridSpec(
            num_scalar_prefetch=0,
            grid=grid,
            in_specs=[
                pl.BlockSpec((tile_n, tile_d), lambda i, k: (i, k)),
                pl.BlockSpec((tile_n, tile_d), lambda i, k: (i, k)),
            ],
            out_specs=pl.BlockSpec((tile_n, 1), lambda i, k: (i, 0)),
            scratch_shapes=[
                pltpu.VMEM((tile_n, _LANE), jnp.float32),   # a  = sum p*t
                pltpu.VMEM((tile_n, _LANE), jnp.float32),   # bc = fused denom
            ],
        ),
        compiler_params=pltpu.CompilerParams(
            dimension_semantics=("parallel", "arbitrary"),
            vmem_limit_bytes=vmem_limit_bytes,
        ),
        cost_estimate=cost,
    )(pred2, tgt2)

    loss = per_sample[:, 0]  # (n,)
    loss = _weight_reduce_loss(loss, weight, reduction, avg_factor)
    return loss_weight * loss


def _dice_loss_ref(pred, target, eps=1e-3, naive=False, apply_sigmoid=True,
                   weight=None, reduction="mean"):
    """Pure-JAX reference mirroring the PyTorch module."""
    n = pred.shape[0]
    p = pred.reshape(n, -1).astype(jnp.float32)
    if apply_sigmoid:
        p = jax.nn.sigmoid(p)
    t = target.reshape(n, -1).astype(jnp.float32)
    a = jnp.sum(p * t, axis=1)
    if naive:
        b = jnp.sum(p, axis=1)
        c = jnp.sum(t, axis=1)
        dcoef = (2 * a + eps) / (b + c + eps)
    else:
        b = jnp.sum(p * p, axis=1) + eps
        c = jnp.sum(t * t, axis=1) + eps
        dcoef = 2 * a / (b + c)
    loss = 1.0 - dcoef
    if weight is not None:
        loss = loss * weight
    if reduction == "mean":
        return jnp.mean(loss)
    if reduction == "sum":
        return jnp.sum(loss)
    return loss


if __name__ == "__main__":
    key = jax.random.PRNGKey(0)
    k1, k2, k3, k4 = jax.random.split(key, 4)

    # --- default config (use_sigmoid=True, activate=True, mean, V-Net dice) ---
    # pred: raw logits, NCHW; target: binary mask, same shape. D = 4*16*16 = 1024.
    pred = jax.random.normal(k1, (2, 4, 16, 16), dtype=jnp.float32)
    target = (jax.random.uniform(k2, (2, 4, 16, 16)) > 0.5).astype(jnp.float32)

    out = dice_loss_pallas(pred, target)
    out = jax.block_until_ready(out)
    ref = _dice_loss_ref(pred, target)
    assert jnp.allclose(out, ref, rtol=1e-4, atol=1e-5), (out, ref)

    # --- ragged D (not a multiple of 128) + naive_dice + reduction='none' -----
    pred_r = jax.random.normal(k3, (3, 5, 7, 9), dtype=jnp.float32)      # D = 315
    target_r = (jax.random.uniform(k4, (3, 5, 7, 9)) > 0.5).astype(jnp.float32)

    out_r = dice_loss_pallas(pred_r, target_r, naive_dice=True, reduction="none")
    out_r = jax.block_until_ready(out_r)
    ref_r = _dice_loss_ref(pred_r, target_r, naive=True, reduction="none")
    assert jnp.allclose(out_r, ref_r, rtol=1e-4, atol=1e-5), (out_r, ref_r)

    # --- force multi-step reduction axis so the gated tail-mask path runs -----
    out_m = dice_loss_pallas(pred_r, target_r, tile_d=128, reduction="sum")
    out_m = jax.block_until_ready(out_m)
    ref_m = _dice_loss_ref(pred_r, target_r, reduction="sum")
    assert jnp.allclose(out_m, ref_m, rtol=1e-4, atol=1e-5), (out_m, ref_m)

    print("KERNEL_OK")
</pallas_src>

<mosaic_0001>
module attributes {stable_mosaic.version = 11 : i64} {
  func.func @_dice_kernel(%arg0: i32, %arg1: i32, %arg2: memref<2x1024xf32, #tpu.memory_space<vmem>>, %arg3: memref<2x1024xf32, #tpu.memory_space<vmem>>, %arg4: memref<2x1xf32, #tpu.memory_space<vmem>>, %arg5: memref<2x128xf32, #tpu.memory_space<vmem>>, %arg6: memref<2x128xf32, #tpu.memory_space<vmem>>) attributes {dimension_semantics = [#tpu.dimension_semantics<parallel>, #tpu.dimension_semantics<arbitrary>], iteration_bounds = array<i64: 1, 1>, scalar_prefetch = 0 : i64, scratch_operands = 2 : i64, tpu.core_type = #tpu.core_type<tc>, window_params = [{transform_indices = @transform_0, window_bounds = array<i64: 2, 1024>}, {transform_indices = @transform_1, window_bounds = array<i64: 2, 1024>}, {transform_indices = @transform_2, window_bounds = array<i64: 2, 1>}]} {
    %c0_i32 = arith.constant 0 : i32
    %0 = arith.cmpi eq, %arg1, %c0_i32 : i32
    %1 = arith.extui %0 : i1 to i32
    %c0_i32_0 = arith.constant 0 : i32
    %2 = arith.cmpi ne, %1, %c0_i32_0 : i32
    scf.if %2 {
      %cst_44 = arith.constant 0.000000e+00 : f32
      %118 = vector.broadcast %cst_44 : f32 to vector<2x128xf32>
      %c0_45 = arith.constant 0 : index
      %c0_46 = arith.constant 0 : index
      %119 = vector.load %arg5[%c0_45, %c0_46] : memref<2x128xf32, #tpu.memory_space<vmem>>, vector<2x128xf32>
      tpu.vector_store %arg5[%c0_45, %c0_46], %118 {strides = array<i32>} : memref<2x128xf32, #tpu.memory_space<vmem>>, vector<2x128xf32>,
      %cst_47 = arith.constant 0.000000e+00 : f32
      %120 = vector.broadcast %cst_47 : f32 to vector<2x128xf32>
      %c0_48 = arith.constant 0 : index
      %c0_49 = arith.constant 0 : index
      %121 = vector.load %arg6[%c0_48, %c0_49] : memref<2x128xf32, #tpu.memory_space<vmem>>, vector<2x128xf32>
      tpu.vector_store %arg6[%c0_48, %c0_49], %120 {strides = array<i32>} : memref<2x128xf32, #tpu.memory_space<vmem>>, vector<2x128xf32>,
    } else {
    }
    %cst = arith.constant 0.000000e+00 : f32
    %3 = vector.broadcast %cst : f32 to vector<2x128xf32>
    %cst_1 = arith.constant 0.000000e+00 : f32
    %4 = vector.broadcast %cst_1 : f32 to vector<2x128xf32>
    %c0 = arith.constant 0 : index
    %c0_2 = arith.constant 0 : index
    %5 = vector.load %arg2[%c0, %c0_2] : memref<2x1024xf32, #tpu.memory_space<vmem>>, vector<2x128xf32>
    %6 = arith.negf %5 : vector<2x128xf32>
    %7 = math.exp %6 : vector<2x128xf32>
    %cst_3 = arith.constant 1.000000e+00 : f32
    %8 = vector.broadcast %cst_3 : f32 to vector<2x128xf32>
    %9 = arith.addf %8, %7 : vector<2x128xf32>
    %10 = arith.divf %8, %9 : vector<2x128xf32>
    %c0_4 = arith.constant 0 : index
    %c0_5 = arith.constant 0 : index
    %11 = vector.load %arg3[%c0_4, %c0_5] : memref<2x1024xf32, #tpu.memory_space<vmem>>, vector<2x128xf32>
    %12 = arith.mulf %10, %11 : vector<2x128xf32>
    %13 = arith.addf %3, %12 : vector<2x128xf32>
    %14 = arith.mulf %10, %10 : vector<2x128xf32>
    %15 = arith.mulf %11, %11 : vector<2x128xf32>
    %16 = arith.addf %14, %15 : vector<2x128xf32>
    %17 = arith.addf %4, %16 : vector<2x128xf32>
    %c0_6 = arith.constant 0 : index
    %c128 = arith.constant 128 : index
    %18 = vector.load %arg2[%c0_6, %c128] : memref<2x1024xf32, #tpu.memory_space<vmem>>, vector<2x128xf32>
    %19 = arith.negf %18 : vector<2x128xf32>
    %20 = math.exp %19 : vector<2x128xf32>
    %cst_7 = arith.constant 1.000000e+00 : f32
    %21 = vector.broadcast %cst_7 : f32 to vector<2x128xf32>
    %22 = arith.addf %21, %20 : vector<2x128xf32>
    %23 = arith.divf %21, %22 : vector<2x128xf32>
    %c0_8 = arith.constant 0 : index
    %c128_9 = arith.constant 128 : index
    %24 = vector.load %arg3[%c0_8, %c128_9] : memref<2x1024xf32, #tpu.memory_space<vmem>>, vector<2x128xf32>
    %25 = arith.mulf %23, %24 : vector<2x128xf32>
    %26 = arith.addf %13, %25 : vector<2x128xf32>
    %27 = arith.mulf %23, %23 : vector<2x128xf32>
    %28 = arith.mulf %24, %24 : vector<2x128xf32>
    %29 = arith.addf %27, %28 : vector<2x128xf32>
    %30 = arith.addf %17, %29 : vector<2x128xf32>
    %c0_10 = arith.constant 0 : index
    %c256 = arith.constant 256 : index
    %31 = vector.load %arg2[%c0_10, %c256] : memref<2x1024xf32, #tpu.memory_space<vmem>>, vector<2x128xf32>
    %32 = arith.negf %31 : vector<2x128xf32>
    %33 = math.exp %32 : vector<2x128xf32>
    %cst_11 = arith.constant 1.000000e+00 : f32
    %34 = vector.broadcast %cst_11 : f32 to vector<2x128xf32>
    %35 = arith.addf %34, %33 : vector<2x128xf32>
    %36 = arith.divf %34, %35 : vector<2x128xf32>
    %c0_12 = arith.constant 0 : index
    %c256_13 = arith.constant 256 : index
    %37 = vector.load %arg3[%c0_12, %c256_13] : memref<2x1024xf32, #tpu.memory_space<vmem>>, vector<2x128xf32>
    %38 = arith.mulf %36, %37 : vector<2x128xf32>
    %39 = arith.addf %26, %38 : vector<2x128xf32>
    %40 = arith.mulf %36, %36 : vector<2x128xf32>
    %41 = arith.mulf %37, %37 : vector<2x128xf32>
    %42 = arith.addf %40, %41 : vector<2x128xf32>
    %43 = arith.addf %30, %42 : vector<2x128xf32>
    %c0_14 = arith.constant 0 : index
    %c384 = arith.constant 384 : index
    %44 = vector.load %arg2[%c0_14, %c384] : memref<2x1024xf32, #tpu.memory_space<vmem>>, vector<2x128xf32>
    %45 = arith.negf %44 : vector<2x128xf32>
    %46 = math.exp %45 : vector<2x128xf32>
    %cst_15 = arith.constant 1.000000e+00 : f32
    %47 = vector.broadcast %cst_15 : f32 to vector<2x128xf32>
    %48 = arith.addf %47, %46 : vector<2x128xf32>
    %49 = arith.divf %47, %48 : vector<2x128xf32>
    %c0_16 = arith.constant 0 : index
    %c384_17 = arith.constant 384 : index
    %50 = vector.load %arg3[%c0_16, %c384_17] : memref<2x1024xf32, #tpu.memory_space<vmem>>, vector<2x128xf32>
    %51 = arith.mulf %49, %50 : vector<2x128xf32>
    %52 = arith.addf %39, %51 : vector<2x128xf32>
    %53 = arith.mulf %49, %49 : vector<2x128xf32>
    %54 = arith.mulf %50, %50 : vector<2x128xf32>
    %55 = arith.addf %53, %54 : vector<2x128xf32>
    %56 = arith.addf %43, %55 : vector<2x128xf32>
    %c0_18 = arith.constant 0 : index
    %c512 = arith.constant 512 : index
    %57 = vector.load %arg2[%c0_18, %c512] : memref<2x1024xf32, #tpu.memory_space<vmem>>, vector<2x128xf32>
    %58 = arith.negf %57 : vector<2x128xf32>
    %59 = math.exp %58 : vector<2x128xf32>
    %cst_19 = arith.constant 1.000000e+00 : f32
    %60 = vector.broadcast %cst_19 : f32 to vector<2x128xf32>
    %61 = arith.addf %60, %59 : vector<2x128xf32>
    %62 = arith.divf %60, %61 : vector<2x128xf32>
    %c0_20 = arith.constant 0 : index
    %c512_21 = arith.constant 512 : index
    %63 = vector.load %arg3[%c0_20, %c512_21] : memref<2x1024xf32, #tpu.memory_space<vmem>>, vector<2x128xf32>
    %64 = arith.mulf %62, %63 : vector<2x128xf32>
    %65 = arith.addf %52, %64 : vector<2x128xf32>
    %66 = arith.mulf %62, %62 : vector<2x128xf32>
    %67 = arith.mulf %63, %63 : vector<2x128xf32>
    %68 = arith.addf %66, %67 : vector<2x128xf32>
    %69 = arith.addf %56, %68 : vector<2x128xf32>
    %c0_22 = arith.constant 0 : index
    %c640 = arith.constant 640 : index
    %70 = vector.load %arg2[%c0_22, %c640] : memref<2x1024xf32, #tpu.memory_space<vmem>>, vector<2x128xf32>
    %71 = arith.negf %70 : vector<2x128xf32>
    %72 = math.exp %71 : vector<2x128xf32>
    %cst_23 = arith.constant 1.000000e+00 : f32
    %73 = vector.broadcast %cst_23 : f32 to vector<2x128xf32>
    %74 = arith.addf %73, %72 : vector<2x128xf32>
    %75 = arith.divf %73, %74 : vector<2x128xf32>
    %c0_24 = arith.constant 0 : index
    %c640_25 = arith.constant 640 : index
    %76 = vector.load %arg3[%c0_24, %c640_25] : memref<2x1024xf32, #tpu.memory_space<vmem>>, vector<2x128xf32>
    %77 = arith.mulf %75, %76 : vector<2x128xf32>
    %78 = arith.addf %65, %77 : vector<2x128xf32>
    %79 = arith.mulf %75, %75 : vector<2x128xf32>
    %80 = arith.mulf %76, %76 : vector<2x128xf32>
    %81 = arith.addf %79, %80 : vector<2x128xf32>
    %82 = arith.addf %69, %81 : vector<2x128xf32>
    %c0_26 = arith.constant 0 : index
    %c768 = arith.constant 768 : index
    %83 = vector.load %arg2[%c0_26, %c768] : memref<2x1024xf32, #tpu.memory_space<vmem>>, vector<2x128xf32>
    %84 = arith.negf %83 : vector<2x128xf32>
    %85 = math.exp %84 : vector<2x128xf32>
    %cst_27 = arith.constant 1.000000e+00 : f32
    %86 = vector.broadcast %cst_27 : f32 to vector<2x128xf32>
    %87 = arith.addf %86, %85 : vector<2x128xf32>
    %88 = arith.divf %86, %87 : vector<2x128xf32>
    %c0_28 = arith.constant 0 : index
    %c768_29 = arith.constant 768 : index
    %89 = vector.load %arg3[%c0_28, %c768_29] : memref<2x1024xf32, #tpu.memory_space<vmem>>, vector<2x128xf32>
    %90 = arith.mulf %88, %89 : vector<2x128xf32>
    %91 = arith.addf %78, %90 : vector<2x128xf32>
    %92 = arith.mulf %88, %88 : vector<2x128xf32>
    %93 = arith.mulf %89, %89 : vector<2x128xf32>
    %94 = arith.addf %92, %93 : vector<2x128xf32>
    %95 = arith.addf %82, %94 : vector<2x128xf32>
    %c0_30 = arith.constant 0 : index
    %c896 = arith.constant 896 : index
    %96 = vector.load %arg2[%c0_30, %c896] : memref<2x1024xf32, #tpu.memory_space<vmem>>, vector<2x128xf32>
    %97 = arith.negf %96 : vector<2x128xf32>
    %98 = math.exp %97 : vector<2x128xf32>
    %cst_31 = arith.constant 1.000000e+00 : f32
    %99 = vector.broadcast %cst_31 : f32 to vector<2x128xf32>
    %100 = arith.addf %99, %98 : vector<2x128xf32>
    %101 = arith.divf %99, %100 : vector<2x128xf32>
    %c0_32 = arith.constant 0 : index
    %c896_33 = arith.constant 896 : index
    %102 = vector.load %arg3[%c0_32, %c896_33] : memref<2x1024xf32, #tpu.memory_space<vmem>>, vector<2x128xf32>
    %103 = arith.mulf %101, %102 : vector<2x128xf32>
    %104 = arith.addf %91, %103 : vector<2x128xf32>
    %105 = arith.mulf %101, %101 : vector<2x128xf32>
    %106 = arith.mulf %102, %102 : vector<2x128xf32>
    %107 = arith.addf %105, %106 : vector<2x128xf32>
    %108 = arith.addf %95, %107 : vector<2x128xf32>
    %c0_34 = arith.constant 0 : index
    %c0_35 = arith.constant 0 : index
    %109 = vector.load %arg5[%c0_34, %c0_35] : memref<2x128xf32, #tpu.memory_space<vmem>>, vector<2x128xf32>
    %110 = arith.addf %109, %104 : vector<2x128xf32>
    %c0_36 = arith.constant 0 : index
    %c0_37 = arith.constant 0 : index
    %111 = vector.load %arg5[%c0_36, %c0_37] : memref<2x128xf32, #tpu.memory_space<vmem>>, vector<2x128xf32>
    tpu.vector_store %arg5[%c0_36, %c0_37], %110 {strides = array<i32>} : memref<2x128xf32, #tpu.memory_space<vmem>>, vector<2x128xf32>,
    %c0_38 = arith.constant 0 : index
    %c0_39 = arith.constant 0 : index
    %112 = vector.load %arg6[%c0_38, %c0_39] : memref<2x128xf32, #tpu.memory_space<vmem>>, vector<2x128xf32>
    %113 = arith.addf %112, %108 : vector<2x128xf32>
    %c0_40 = arith.constant 0 : index
    %c0_41 = arith.constant 0 : index
    %114 = vector.load %arg6[%c0_40, %c0_41] : memref<2x128xf32, #tpu.memory_space<vmem>>, vector<2x128xf32>
    tpu.vector_store %arg6[%c0_40, %c0_41], %113 {strides = array<i32>} : memref<2x128xf32, #tpu.memory_space<vmem>>, vector<2x128xf32>,
    %c0_i32_42 = arith.constant 0 : i32
    %115 = arith.cmpi eq, %arg1, %c0_i32_42 : i32
    %116 = arith.extui %115 : i1 to i32
    %c0_i32_43 = arith.constant 0 : i32
    %117 = arith.cmpi ne, %116, %c0_i32_43 : i32
    scf.if %117 {
      %c0_44 = arith.constant 0 : index
      %c0_45 = arith.constant 0 : index
      %118 = vector.load %arg5[%c0_44, %c0_45] : memref<2x128xf32, #tpu.memory_space<vmem>>, vector<2x128xf32>
      %cst_46 = arith.constant dense<0.000000e+00> : vector<2xf32>
      %119 = vector.multi_reduction <add>, %118, %cst_46 [1] : vector<2x128xf32> to vector<2xf32>
      %120 = vector.shape_cast %119 : vector<2xf32> to vector<2x1xf32>
      %c0_47 = arith.constant 0 : index
      %c0_48 = arith.constant 0 : index
      %121 = vector.load %arg6[%c0_47, %c0_48] : memref<2x128xf32, #tpu.memory_space<vmem>>, vector<2x128xf32>
      %cst_49 = arith.constant dense<0.000000e+00> : vector<2xf32>
      %122 = vector.multi_reduction <add>, %121, %cst_49 [1] : vector<2x128xf32> to vector<2xf32>
      %123 = vector.shape_cast %122 : vector<2xf32> to vector<2x1xf32>
      %cst_50 = arith.constant 2.000000e+00 : f32
      %124 = vector.broadcast %cst_50 : f32 to vector<2x1xf32>
      %125 = arith.mulf %124, %120 : vector<2x1xf32>
      %cst_51 = arith.constant 2.000000e-03 : f32
      %126 = vector.broadcast %cst_51 : f32 to vector<2x1xf32>
      %127 = arith.addf %123, %126 : vector<2x1xf32>
      %128 = arith.divf %125, %127 : vector<2x1xf32>
      %cst_52 = arith.constant 1.000000e+00 : f32
      %129 = vector.broadcast %cst_52 : f32 to vector<2x1xf32>
      %130 = arith.subf %129, %128 : vector<2x1xf32>
      %c0_53 = arith.constant 0 : index
      %c0_54 = arith.constant 0 : index
      %131 = vector.load %arg4[%c0_53, %c0_54] : memref<2x1xf32, #tpu.memory_space<vmem>>, vector<2x1xf32>
      tpu.vector_store %arg4[%c0_53, %c0_54], %130 {strides = array<i32>} : memref<2x1xf32, #tpu.memory_space<vmem>>, vector<2x1xf32>,
    } else {
    }
    return
  }
  func.func @transform_0(%arg0: i32, %arg1: i32) -> (i32, i32) {
    %c0_i32 = arith.constant 0 : i32
    return %arg0, %arg1 : i32, i32
  }
  func.func @transform_1(%arg0: i32, %arg1: i32) -> (i32, i32) {
    %c0_i32 = arith.constant 0 : i32
    return %arg0, %arg1 : i32, i32
  }
  func.func @transform_2(%arg0: i32, %arg1: i32) -> (i32, i32) {
    %c0_i32 = arith.constant 0 : i32
    %c0_i32_0 = arith.constant 0 : i32
    return %arg0, %c0_i32 : i32, i32
  }
}

</mosaic_0001>

<llo_original>
// kernel: tpu_custom_call.1
$region0: #{tpu_custom_call.1}
  #allocation0 [shape = 'u32[]', space=smem, size = 0x4, offset = 0x4, fixed_abs, tag = 'smem constant byte address 0x4 - core index']
  #allocation1 [shape = 'u32[144,128]{1,0:T(1,128)}', space=vmem, size = 0x12000, scoped, tag = 'internal scratch']
  #allocation2 [shape = 'f32[2,128]{1,0:T(2,128)}', space=vmem, size = 0x400, scoped, tag = 'scratch operand']
  #allocation3 [shape = 'f32[2,128]{1,0:T(2,128)}', space=vmem, size = 0x400, scoped, tag = 'scratch operand']
  %s0 = inlined_call_operand.hbm [shape: f32[2,1024], index: 0, kind: input, shape index: {}]
  %s1 = inlined_call_operand.hbm [shape: f32[2,1024], index: 1, kind: input, shape index: {}]
  %s2 = inlined_call_operand.vmem [shape: f32[2,1], index: 2, kind: output, shape index: {}]
  %s3 = sld [smem:[#allocation0]]
  $region34: #{tpu_custom_call.1} parent=0
    _
  %s5 = ssub.s32 1, %s3
  %s6 = scalar_select 0, %s5, %s3
  $region1: #{tpu_custom_call.1} parent=0
    #allocation4 [shape = 'u8[8192]{0}', space=vmem, size = 0x2000, scoped, tag = 'input window, operand 0, single buffered']
    #allocation5 [shape = 's32[1]{0}', space=sflag, size = 0x4, scoped, tag = 'scoped memory for tpu_custom_call.1']
    #allocation6 [shape = 'u8[8192]{0}', space=vmem, size = 0x2000, scoped, tag = 'input window, operand 1, single buffered']
    #allocation7 [shape = 's32[1]{0}', space=sflag, size = 0x4, scoped, tag = 'scoped memory for tpu_custom_call.1']
    %7 = vsyncpa [#allocation5], 0
    %8 = vsyncpa [#allocation7], 0
    // Predicated region
    $region2: #{tpu_custom_call.1} parent=1 // pred_check
      _
    $region3: #{tpu_custom_call.1} parent=1 // pred_check_branch
      %10 = sbr.rel (0) target = $region5
    $region4: #{tpu_custom_call.1} parent=1 // pred_region
      %s12 = ssub.s32 256, 256
      %13 = vsyncadd [#allocation5], %s12
      %s15 = sshll.u32 [#allocation4], 4
      %s16 = int_to_ptr.vmem [resolvable:$true] %s15
      %18 = dma.hbm_to_vmem [thread:$0]  %s0, 256, %s16, [#allocation5]
    $region5: #{tpu_custom_call.1} parent=1 // pred_fallthru
      _
    // Predicated region
    $region6: #{tpu_custom_call.1} parent=1 // pred_check
      _
    $region7: #{tpu_custom_call.1} parent=1 // pred_check_branch
      %20 = sbr.rel (0) target = $region9
    $region8: #{tpu_custom_call.1} parent=1 // pred_region
      %s22 = ssub.s32 256, 256
      %23 = vsyncadd [#allocation7], %s22
      %s25 = sshll.u32 [#allocation6], 4
      %s26 = int_to_ptr.vmem [resolvable:$true] %s25
      %28 = dma.hbm_to_vmem [thread:$0]  %s1, 256, %s26, [#allocation7]
    $region9: #{tpu_custom_call.1} parent=1 // pred_fallthru
      _
    // Predicated region
    $region10: #{tpu_custom_call.1} parent=1 // pred_check
      _
    $region11: #{tpu_custom_call.1} parent=1 // pred_check_branch
      %30 = sbr.rel (0) target = $region13
    $region12: #{tpu_custom_call.1} parent=1 // pred_region
      %31 = dma.done [#allocation5], 256
    $region13: #{tpu_custom_call.1} parent=1 // pred_fallthru
      _
    // Predicated region
    $region14: #{tpu_custom_call.1} parent=1 // pred_check
      _
    $region15: #{tpu_custom_call.1} parent=1 // pred_check_branch
      %33 = sbr.rel (0) target = $region17
    $region16: #{tpu_custom_call.1} parent=1 // pred_region
      %34 = dma.done [#allocation7], 256
    $region17: #{tpu_custom_call.1} parent=1 // pred_fallthru
      _
    %p35 = scmp.eq.s32.totalorder 0, 0
    // Predicated region
    $region18: #{tpu_custom_call.1} parent=1 // pred_check
      %p36 = pneg %p35
    $region19: #{tpu_custom_call.1} parent=1 // pred_check_branch
      %38 = sbr.rel (%p36) target = $region21
    $region20: #{tpu_custom_call.1} parent=1 // pred_region
      %39 = vst [vmem:[#allocation2] sm:$0x3] 0.0
      %40 = vst [vmem:[#allocation3] sm:$0x3] 0.0
    $region21: #{tpu_custom_call.1} parent=1 // pred_fallthru
      _
    %v41 = vld [vmem:[#allocation4] sm:$0x3]
    %v42 = vxor.u32 %v41, 2147483648
    %v43 = vmul.f32 %v42, 1.442695
    %v44 = vpow.pop %v43
    %v45 = vadd.f32 %v44, 1.0
    %v46 = vrcp.pop %v45
    %v47 = vmul.f32 1.0, %v46
    %v48 = vld [vmem:[#allocation6] sm:$0x3]
    %v49 = vmul.f32 %v47, %v48
    %v50 = vadd.f32 %v49, 0.0
    %v51 = vmul.f32 %v47, %v47
    %v52 = vmul.f32 %v48, %v48
    %v53 = vadd.f32 %v51, %v52
    %v54 = vadd.f32 %v53, 0.0
    %v55 = vld [vmem:[#allocation4 + $0x2] sm:$0x3]
    %v56 = vxor.u32 %v55, 2147483648
    %v57 = vmul.f32 %v56, 1.442695
    %v58 = vpow.pop %v57
    %v59 = vadd.f32 %v58, 1.0
    %v60 = vrcp.pop %v59
    %v61 = vmul.f32 1.0, %v60
    %v62 = vld [vmem:[#allocation6 + $0x2] sm:$0x3]
    %v63 = vmul.f32 %v61, %v62
    %v64 = vadd.f32 %v50, %v63
    %v65 = vmul.f32 %v61, %v61
    %v66 = vmul.f32 %v62, %v62
    %v67 = vadd.f32 %v65, %v66
    %v68 = vadd.f32 %v54, %v67
    %v69 = vld [vmem:[#allocation4 + $0x4] sm:$0x3]
    %v70 = vxor.u32 %v69, 2147483648
    %v71 = vmul.f32 %v70, 1.442695
    %v72 = vpow.pop %v71
    %v73 = vadd.f32 %v72, 1.0
    %v74 = vrcp.pop %v73
    %v75 = vmul.f32 1.0, %v74
    %v76 = vld [vmem:[#allocation6 + $0x4] sm:$0x3]
    %v77 = vmul.f32 %v75, %v76
    %v78 = vadd.f32 %v64, %v77
    %v79 = vmul.f32 %v75, %v75
    %v80 = vmul.f32 %v76, %v76
    %v81 = vadd.f32 %v79, %v80
    %v82 = vadd.f32 %v68, %v81
    %v83 = vld [vmem:[#allocation4 + $0x6] sm:$0x3]
    %v84 = vxor.u32 %v83, 2147483648
    %v85 = vmul.f32 %v84, 1.442695
    %v86 = vpow.pop %v85
    %v87 = vadd.f32 %v86, 1.0
    %v88 = vrcp.pop %v87
    %v89 = vmul.f32 1.0, %v88
    %v90 = vld [vmem:[#allocation6 + $0x6] sm:$0x3]
    %v91 = vmul.f32 %v89, %v90
    %v92 = vadd.f32 %v78, %v91
    %v93 = vmul.f32 %v89, %v89
    %v94 = vmul.f32 %v90, %v90
    %v95 = vadd.f32 %v93, %v94
    %v96 = vadd.f32 %v82, %v95
    %v97 = vld [vmem:[#allocation4 + $0x8] sm:$0x3]
    %v98 = vxor.u32 %v97, 2147483648
    %v99 = vmul.f32 %v98, 1.442695
    %v100 = vpow.pop %v99
    %v101 = vadd.f32 %v100, 1.0
    %v102 = vrcp.pop %v101
    %v103 = vmul.f32 1.0, %v102
    %v104 = vld [vmem:[#allocation6 + $0x8] sm:$0x3]
    %v105 = vmul.f32 %v103, %v104
    %v106 = vadd.f32 %v92, %v105
    %v107 = vmul.f32 %v103, %v103
    %v108 = vmul.f32 %v104, %v104
    %v109 = vadd.f32 %v107, %v108
    %v110 = vadd.f32 %v96, %v109
    %v111 = vld [vmem:[#allocation4 + $0xa] sm:$0x3]
    %v112 = vxor.u32 %v111, 2147483648
    %v113 = vmul.f32 %v112, 1.442695
    %v114 = vpow.pop %v113
    %v115 = vadd.f32 %v114, 1.0
    %v116 = vrcp.pop %v115
    %v117 = vmul.f32 1.0, %v116
    %v118 = vld [vmem:[#allocation6 + $0xa] sm:$0x3]
    %v119 = vmul.f32 %v117, %v118
    %v120 = vadd.f32 %v106, %v119
    %v121 = vmul.f32 %v117, %v117
    %v122 = vmul.f32 %v118, %v118
    %v123 = vadd.f32 %v121, %v122
    %v124 = vadd.f32 %v110, %v123
    %v125 = vld [vmem:[#allocation4 + $0xc] sm:$0x3]
    %v126 = vxor.u32 %v125, 2147483648
    %v127 = vmul.f32 %v126, 1.442695
    %v128 = vpow.pop %v127
    %v129 = vadd.f32 %v128, 1.0
    %v130 = vrcp.pop %v129
    %v131 = vmul.f32 1.0, %v130
    %v132 = vld [vmem:[#allocation6 + $0xc] sm:$0x3]
    %v133 = vmul.f32 %v131, %v132
    %v134 = vadd.f32 %v120, %v133
    %v135 = vmul.f32 %v131, %v131
    %v136 = vmul.f32 %v132, %v132
    %v137 = vadd.f32 %v135, %v136
    %v138 = vadd.f32 %v124, %v137
    %v139 = vld [vmem:[#allocation4 + $0xe] sm:$0x3]
    %v140 = vxor.u32 %v139, 2147483648
    %v141 = vmul.f32 %v140, 1.442695
    %v142 = vpow.pop %v141
    %v143 = vadd.f32 %v142, 1.0
    %v144 = vrcp.pop %v143
    %v145 = vmul.f32 1.0, %v144
    %v146 = vld [vmem:[#allocation6 + $0xe] sm:$0x3]
    %v147 = vmul.f32 %v145, %v146
    %v148 = vadd.f32 %v134, %v147
    %v149 = vmul.f32 %v145, %v145
    %v150 = vmul.f32 %v146, %v146
    %v151 = vadd.f32 %v149, %v150
    %v152 = vadd.f32 %v138, %v151
    %v153 = vld [vmem:[#allocation2] sm:$0x3]
    %v154 = vadd.f32 %v153, %v148
    %155 = vst [vmem:[#allocation2] sm:$0x3] %v154
    %v156 = vld [vmem:[#allocation3] sm:$0x3]
    %v157 = vadd.f32 %v156, %v152
    %158 = vst [vmem:[#allocation3] sm:$0x3] %v157
    // Predicated region
    $region22: #{tpu_custom_call.1} parent=1 // pred_check
      %p159 = pneg %p35
    $region23: #{tpu_custom_call.1} parent=1 // pred_check_branch
      %161 = sbr.rel (%p159) target = $region25
    $region24: #{tpu_custom_call.1} parent=1 // pred_region
      %v162 = vld [vmem:[#allocation2] sm:$0x3]
      %vm163 = vcmask 1041408
      %v164 = vsel %vm163, %v162, 0.0
      %165 = vadd.xlane.f32.xlu0 %v164
      %v166 = vpop.xlane.xlu0 %165
      %v167 = vld [vmem:[#allocation3] sm:$0x3]
      %v168 = vsel %vm163, %v167, 0.0
      %169 = vadd.xlane.f32.xlu0 %v168
      %v170 = vpop.xlane.xlu0 %169
      %v171 = vmul.f32 %v166, 2.0
      %v172 = vadd.f32 %v170, 0.002
      %v173 = vrcp.pop %v172
      %v174 = vmul.f32 %v171, %v173
      %v175 = vsub.f32 1.0, %v174
      %vm176 = vcmask 1024
      %177 = vst.msk [vmem:[%s2] sm:$0x3] %vm176, %v175
    $region25: #{tpu_custom_call.1} parent=1 // pred_fallthru
      _
    // Predicated region
    $region26: #{tpu_custom_call.1} parent=1 // pred_check
      _
    $region27: #{tpu_custom_call.1} parent=1 // pred_check_branch
      %179 = sbr.rel (0) target = $region29
    $region28: #{tpu_custom_call.1} parent=1 // pred_region
      _
    $region29: #{tpu_custom_call.1} parent=1 // pred_fallthru
      _
    // Predicated region
    $region30: #{tpu_custom_call.1} parent=1 // pred_check
      _
    $region31: #{tpu_custom_call.1} parent=1 // pred_check_branch
      %181 = sbr.rel (0) target = $region33
    $region32: #{tpu_custom_call.1} parent=1 // pred_region
      _
    $region33: #{tpu_custom_call.1} parent=1 // pred_fallthru
      _
    %182 = vsyncpa [#allocation5], 1
    %183 = vsyncpa [#allocation7], 1

</llo_original>
